<compile_context>
chip_gen: v7x
topology: tpu7x:2x2x1
jax: 0.10.0
libtpu: 0.0.40
codegen_flags: <defaults>
</compile_context>

<pallas_src>
import functools

import numpy as np
import jax
import jax.numpy as jnp
from jax.experimental import pallas as pl
from jax.experimental.pallas import tpu as pltpu


def _rope_kernel(pos_ref, inv_freq_ref, cos_ref, sin_ref, *, half_dim):
    # pos_ref: (TB, half_dim) int32; inv_freq_ref: (1, half_dim) f32;
    # cos_ref/sin_ref: (TB, dim) in output dtype.
    inv_freq = inv_freq_ref[...]                                  # (1, half_dim) f32, host-exact
    pos = pos_ref[...].astype(jnp.float32)                        # in-kernel cast (VPU)
    freqs = pos * inv_freq                                        # broadcast over rows, f32

    cos_h = jnp.cos(freqs).astype(cos_ref.dtype)                  # cast once per half
    sin_h = jnp.sin(freqs).astype(sin_ref.dtype)

    if half_dim % 128 == 0:
        # Two lane-aligned, unmasked full-width stores; no block-sized concat temp.
        cos_ref[:, :half_dim] = cos_h
        cos_ref[:, half_dim:] = cos_h
        sin_ref[:, :half_dim] = sin_h
        sin_ref[:, half_dim:] = sin_h
    else:
        # Small dims: a single lane-dense store beats two sub-128-lane masked stores.
        cos_ref[...] = jnp.concatenate([cos_h, cos_h], axis=-1)
        sin_ref[...] = jnp.concatenate([sin_h, sin_h], axis=-1)


def _pick_row_tile(B, half_dim, dim, out_bytes, max_rows):
    """Rows per grid step.

    Big enough to amortize the ~0.35 us/step overhead, small enough to double-buffer
    comfortably inside the tightest scoped-VMEM default (v7x 32 MiB), and capped at
    ~B/2 so the grid has >= 2 steps and both v7x TensorCores get work.
    """
    mult = max(8, 32 // out_bytes)  # sublane packing: 8 rows (f32) / 16 (bf16)
    # Per-row VMEM bytes: double-buffered I/O (int32 positions in, cos+sin out)
    # plus in-kernel f32 temporaries (pos_f32, freqs, cos_h, sin_h, store staging).
    per_row = (2 * (4 * half_dim + 2 * dim * out_bytes)      # 2x buffered in + 2 outs
               + 4 * half_dim * 4                            # pos_f32, freqs, cos_h, sin_h
               + 2 * dim * 4)                                # staging for the duplicated halves
    budget = 8 * 1024 * 1024                                 # conservative across v5e/v6e/v7x
    tb = min(int(max_rows), max(mult, budget // max(per_row, 1)))
    if B > 2 * mult:
        # Ensure at least 2 grid steps (v7x megacore) when B allows it.
        tb = min(tb, max(mult, (pl.cdiv(B, 2) // mult) * mult))
    tb = max(mult, (tb // mult) * mult)
    if B <= tb:
        return B                                             # single full-array block (always legal)
    return tb


def gemma_rotary_embedding(x, position_ids, dim, base=10000.0, max_rows_per_tile=2048):
    """Returns (cos, sin), each of shape (B, dim) with dtype == x.dtype."""
    half_dim = dim // 2
    assert position_ids.shape[-1] == half_dim, "einsum 'bd,dd->bd' requires d == dim//2"
    # NOTE: int32 -> f32 position cast is exact for positions < 2^24 (all realistic contexts).
    B = position_ids.shape[0]
    out_dtype = x.dtype
    out_bytes = jnp.dtype(out_dtype).itemsize

    # inv_freq in float64 on the host, rounded once to f32 (no in-kernel exp drift).
    inv_freq_f64 = 1.0 / (np.float64(base) ** (np.arange(0, dim, 2, dtype=np.float64) / np.float64(dim)))
    inv_freq = jnp.asarray(inv_freq_f64.reshape(1, half_dim), dtype=jnp.float32)

    tb = _pick_row_tile(B, half_dim, dim, out_bytes, max_rows_per_tile)
    grid = (pl.cdiv(B, tb),)

    # Explicit scoped-VMEM request: double-buffered I/O + f32 temporaries + margin,
    # clamped to stay under every chip's default scoped limit.
    block_io = tb * half_dim * 4 + 2 * tb * dim * out_bytes + half_dim * 4
    block_tmp = tb * (4 * half_dim + 2 * dim) * 4
    vmem_limit = int(min(max(2 * block_io + block_tmp + (2 << 20), 8 << 20), 32 << 20))

    kernel = functools.partial(_rope_kernel, half_dim=half_dim)

    cost = pl.CostEstimate(
        flops=2 * B * half_dim,                         # pos*inv_freq + casts (negligible)
        transcendentals=2 * B * half_dim,               # one cos + one sin per (row, freq)
        bytes_accessed=B * half_dim * 4 + 2 * B * dim * out_bytes + half_dim * 4,
    )

    cos, sin = pl.pallas_call(
        kernel,
        out_shape=(
            jax.ShapeDtypeStruct((B, dim), out_dtype),
            jax.ShapeDtypeStruct((B, dim), out_dtype),
        ),
        grid_spec=pl.GridSpec(
            grid=grid,
            in_specs=[
                pl.BlockSpec((tb, half_dim), lambda i: (i, 0)),
                pl.BlockSpec((1, half_dim), lambda i: (0, 0)),   # tiny constant, re-used each step
            ],
            out_specs=(
                pl.BlockSpec((tb, dim), lambda i: (i, 0)),
                pl.BlockSpec((tb, dim), lambda i: (i, 0)),
            ),
        ),
        compiler_params=pltpu.CompilerParams(
            # Row axis is independent -> shard across v7x's 2 TensorCores; harmless on v5e/v6e.
            dimension_semantics=("parallel",),
            vmem_limit_bytes=vmem_limit,
        ),
        cost_estimate=cost,
    )(position_ids.astype(jnp.int32), inv_freq)
    return cos, sin


def _reference(position_ids, dim, base, out_dtype):
    inv_freq = 1.0 / (base ** (jnp.arange(0, dim, 2, dtype=jnp.float32) / dim))
    freqs = position_ids.astype(jnp.float32) * inv_freq[None, :]
    emb = jnp.concatenate([freqs, freqs], axis=-1)
    return jnp.cos(emb).astype(out_dtype), jnp.sin(emb).astype(out_dtype)


if __name__ == "__main__":
    key = jax.random.PRNGKey(0)
    k_pos, k_x, k_pos2, k_x2 = jax.random.split(key, 4)

    # --- Test 1: small shapes (B=2, dim=32, seq=8), f32 outputs, single full-array block. ---
    B, dim, seq = 2, 32, 8
    half_dim = dim // 2
    position_ids = jax.random.randint(k_pos, (B, half_dim), 0, 2048, dtype=jnp.int32)
    x = jax.random.normal(k_x, (B, seq, dim), dtype=jnp.float32)

    cos, sin = gemma_rotary_embedding(x, position_ids, dim=dim, base=10000.0)
    cos = jax.block_until_ready(cos)
    sin = jax.block_until_ready(sin)

    cos_ref, sin_ref = _reference(position_ids, dim, 10000.0, x.dtype)
    assert cos.shape == (B, dim) and sin.shape == (B, dim)
    assert cos.dtype == x.dtype and sin.dtype == x.dtype
    # inv_freq is now host-computed in f64; remaining tolerance covers f32 cos/sin
    # range-reduction differences at angles up to ~2048 rad.
    assert jnp.allclose(cos, cos_ref, atol=1e-3, rtol=1e-3)
    assert jnp.allclose(sin, sin_ref, atol=1e-3, rtol=1e-3)

    # --- Test 2: exercise the tiled (multi-block, ragged last tile) path with bf16 output. ---
    B2 = 40
    position_ids2 = jax.random.randint(k_pos2, (B2, half_dim), 0, 2048, dtype=jnp.int32)
    x2 = jax.random.normal(k_x2, (B2, seq, dim), dtype=jnp.bfloat16)

    cos2, sin2 = gemma_rotary_embedding(x2, position_ids2, dim=dim, base=10000.0,
                                        max_rows_per_tile=16)  # forces grid=(3,) with ragged tail
    cos2 = jax.block_until_ready(cos2)
    sin2 = jax.block_until_ready(sin2)

    cos2_ref, sin2_ref = _reference(position_ids2, dim, 10000.0, x2.dtype)
    assert cos2.shape == (B2, dim) and cos2.dtype == x2.dtype
    assert jnp.allclose(cos2.astype(jnp.float32), cos2_ref.astype(jnp.float32), atol=2e-2, rtol=2e-2)
    assert jnp.allclose(sin2.astype(jnp.float32), sin2_ref.astype(jnp.float32), atol=2e-2, rtol=2e-2)

    print("KERNEL_OK")
</pallas_src>

<mosaic_0001>
module attributes {stable_mosaic.version = 11 : i64} {
  func.func @_rope_kernel(%arg0: i32, %arg1: memref<2x16xi32, #tpu.memory_space<vmem>>, %arg2: memref<1x16xf32, #tpu.memory_space<vmem>>, %arg3: memref<2x32xf32, #tpu.memory_space<vmem>>, %arg4: memref<2x32xf32, #tpu.memory_space<vmem>>) attributes {dimension_semantics = [#tpu.dimension_semantics<parallel>], iteration_bounds = array<i64: 1>, scalar_prefetch = 0 : i64, scratch_operands = 0 : i64, tpu.core_type = #tpu.core_type<tc>, window_params = [{transform_indices = @transform_0, window_bounds = array<i64: 2, 16>}, {pipeline_mode = #tpu.pipeline_mode<synchronous>, transform_indices = @transform_1, window_bounds = array<i64: 1, 16>}, {transform_indices = @transform_2, window_bounds = array<i64: 2, 32>}, {transform_indices = @transform_3, window_bounds = array<i64: 2, 32>}]} {
    %c0 = arith.constant 0 : index
    %c0_0 = arith.constant 0 : index
    %0 = vector.load %arg2[%c0, %c0_0] : memref<1x16xf32, #tpu.memory_space<vmem>>, vector<1x16xf32>
    %c0_1 = arith.constant 0 : index
    %c0_2 = arith.constant 0 : index
    %1 = vector.load %arg1[%c0_1, %c0_2] : memref<2x16xi32, #tpu.memory_space<vmem>>, vector<2x16xi32>
    %2 = arith.sitofp %1 : vector<2x16xi32> to vector<2x16xf32>
    %3 = vector.broadcast %0 : vector<1x16xf32> to vector<2x16xf32>
    %4 = arith.mulf %2, %3 : vector<2x16xf32>
    %5 = math.cos %4 : vector<2x16xf32>
    %6 = math.sin %4 : vector<2x16xf32>
    %7 = tpu.concatenate %5, %5 in 1 : vector<2x16xf32>, vector<2x16xf32> -> vector<2x32xf32>
    %c0_3 = arith.constant 0 : index
    %c0_4 = arith.constant 0 : index
    %8 = vector.load %arg3[%c0_3, %c0_4] : memref<2x32xf32, #tpu.memory_space<vmem>>, vector<2x32xf32>
    tpu.vector_store %arg3[%c0_3, %c0_4], %7 {strides = array<i32>} : memref<2x32xf32, #tpu.memory_space<vmem>>, vector<2x32xf32>,
    %9 = tpu.concatenate %6, %6 in 1 : vector<2x16xf32>, vector<2x16xf32> -> vector<2x32xf32>
    %c0_5 = arith.constant 0 : index
    %c0_6 = arith.constant 0 : index
    %10 = vector.load %arg4[%c0_5, %c0_6] : memref<2x32xf32, #tpu.memory_space<vmem>>, vector<2x32xf32>
    tpu.vector_store %arg4[%c0_5, %c0_6], %9 {strides = array<i32>} : memref<2x32xf32, #tpu.memory_space<vmem>>, vector<2x32xf32>,
    return
  }
  func.func @transform_0(%arg0: i32) -> (i32, i32) {
    %c0_i32 = arith.constant 0 : i32
    %c0_i32_0 = arith.constant 0 : i32
    return %arg0, %c0_i32 : i32, i32
  }
  func.func @transform_1(%arg0: i32) -> (i32, i32) {
    %c0_i32 = arith.constant 0 : i32
    %c0_i32_0 = arith.constant 0 : i32
    %c0_i32_1 = arith.constant 0 : i32
    return %c0_i32, %c0_i32_0 : i32, i32
  }
  func.func @transform_2(%arg0: i32) -> (i32, i32) {
    %c0_i32 = arith.constant 0 : i32
    %c0_i32_0 = arith.constant 0 : i32
    return %arg0, %c0_i32 : i32, i32
  }
  func.func @transform_3(%arg0: i32) -> (i32, i32) {
    %c0_i32 = arith.constant 0 : i32
    %c0_i32_0 = arith.constant 0 : i32
    return %arg0, %c0_i32 : i32, i32
  }
}

</mosaic_0001>

<llo_original>
// kernel: tpu_custom_call.1
$region0: #{tpu_custom_call.1}
  #allocation0 [shape = 'u32[]', space=smem, size = 0x4, offset = 0x4, fixed_abs, tag = 'smem constant byte address 0x4 - core index']
  #allocation1 [shape = 'u32[144,128]{1,0:T(1,128)}', space=vmem, size = 0x12000, scoped, tag = 'internal scratch']
  %s0 = inlined_call_operand.hbm [shape: s32[2,16], index: 0, kind: input, shape index: {}]
  %s1 = inlined_call_operand.vmem [shape: f32[1,16], index: 1, kind: input, shape index: {}]
  %s2 = inlined_call_operand.hbm [shape: f32[2,32], index: 2, kind: output, shape index: {0}]
  %s3 = inlined_call_operand.hbm [shape: f32[2,32], index: 3, kind: output, shape index: {1}]
  %4 = xla_tuple %s2, %s3
  %s5 = sld [smem:[#allocation0]]
  $region30: #{tpu_custom_call.1} parent=0
    _
  %s7 = ssub.s32 1, %s5
  %s8 = scalar_select 0, %s7, %s5
  $region1: #{tpu_custom_call.1} parent=0
    #allocation2 [shape = 'u8[1024]{0}', space=vmem, size = 0x400, scoped, tag = 'input window, operand 0, single buffered']
    #allocation3 [shape = 's32[1]{0}', space=sflag, size = 0x4, scoped, tag = 'scoped memory for tpu_custom_call.1']
    #allocation4 [shape = 's32[1]{0}', space=sflag, size = 0x4, scoped, tag = 'scoped memory for tpu_custom_call.1']
    #allocation5 [shape = 'u8[1024]{0}', space=vmem, size = 0x400, scoped, tag = 'output window, operand 0, single buffered']
    #allocation6 [shape = 'u8[1024]{0}', space=vmem, size = 0x400, scoped, tag = 'output window, operand 1, single buffered']
    #allocation7 [shape = 's32[1]{0}', space=sflag, size = 0x4, scoped, tag = 'scoped memory for tpu_custom_call.1']
    %9 = vsyncpa [#allocation3], 0
    %10 = vsyncpa [#allocation4], 0
    %11 = vsyncpa [#allocation7], 0
    // Predicated region
    $region2: #{tpu_custom_call.1} parent=1 // pred_check
      _
    $region3: #{tpu_custom_call.1} parent=1 // pred_check_branch
      %13 = sbr.rel (0) target = $region5
    $region4: #{tpu_custom_call.1} parent=1 // pred_region
      %s15 = ssub.s32 32, 32
      %16 = vsyncadd [#allocation3], %s15
      %s18 = sshll.u32 [#allocation2], 4
      %s19 = int_to_ptr.vmem [resolvable:$true] %s18
      %21 = dma.hbm_to_vmem [thread:$0]  %s0, 32, %s19, [#allocation3]
    $region5: #{tpu_custom_call.1} parent=1 // pred_fallthru
      _
    // Predicated region
    $region6: #{tpu_custom_call.1} parent=1 // pred_check
      _
    $region7: #{tpu_custom_call.1} parent=1 // pred_check_branch
      %23 = sbr.rel (0) target = $region9
    $region8: #{tpu_custom_call.1} parent=1 // pred_region
      _
    $region9: #{tpu_custom_call.1} parent=1 // pred_fallthru
      _
    // Predicated region
    $region10: #{tpu_custom_call.1} parent=1 // pred_check
      _
    $region11: #{tpu_custom_call.1} parent=1 // pred_check_branch
      %25 = sbr.rel (0) target = $region13
    $region12: #{tpu_custom_call.1} parent=1 // pred_region
      %26 = dma.done [#allocation3], 32
    $region13: #{tpu_custom_call.1} parent=1 // pred_fallthru
      _
    %v27 = vld [vmem:[%s1] sm:$0x1]
    %v28 = vld [vmem:[#allocation2] sm:$0x3]
    %v29 = vcvt.s32.f32 %v28
    %v31 = vlaneseq
    %v32 = vshrl.u32 %v31, 7
    %v33 = vsub.s32 0, %v32
    %v34 = vrot.slane %v27, %v33
    %v36 = vmul.f32 %v29, %v34
    %v37 = vand.u32 2147483647, %v36
    %vm38 = vcmp.le.f32.partialorder %v37, 0.7853982
    %vm39 = vcmp.lt.s32.totalorder %v36, 0
    %v40 = vand.u32 %v36, 2139095040
    %v41 = vshrl.u32 %v40, 23
    %v42 = vsub.s32 %v41, 127
    %v43 = vand.u32 2147483647, %v36
    %v44 = vand.u32 %v43, 8388607
    %v45 = vor.u32 %v44, 8388608
    %v46 = vsub.s32 0, %v45
    %v47 = vadd.s32 %v42, 1
    %vm48 = vcmp.gt.s32.totalorder %v47, 0
    %v49 = vsel %vm48, %v47, 0
    %v50 = vshrl.u32 %v49, 5
    %v51 = vand.u32 %v49, 31
    %v52 = vsub.s32 32, %v51
    %v53 = vshrl.u32 683565275, %v52
    %v54 = vshll.u32 683565275, %v51
    %v55 = vshrl.u32 2475754826, %v52
    %v56 = vor.u32 %v54, %v55
    %v57 = vshll.u32 2475754826, %v51
    %v58 = vshrl.u32 2131351028, %v52
    %v59 = vor.u32 %v57, %v58
    %v60 = vshll.u32 2131351028, %v51
    %v61 = vshrl.u32 2102212464, %v52
    %v62 = vor.u32 %v60, %v61
    %v63 = vshll.u32 2102212464, %v51
    %v64 = vshrl.u32 920167782, %v52
    %v65 = vor.u32 %v63, %v64
    %v66 = vshll.u32 920167782, %v51
    %v67 = vshrl.u32 1326507024, %v52
    %v68 = vor.u32 %v66, %v67
    %vm69 = vcmp.lt.s32.totalorder %v50, 1
    %vm70 = vcmp.lt.s32.totalorder %v50, 2
    %vm71 = vcmp.lt.s32.totalorder %v50, 3
    %vm72 = vcmp.lt.s32.totalorder %v50, 4
    %v73 = vsel %vm69, %v53, %v56
    %v74 = vsel %vm72, %v62, 2102212464
    %v75 = vsel %vm71, %v59, %v74
    %v76 = vsel %vm70, %v73, %v75
    %v77 = vsel %vm69, %v56, %v59
    %v78 = vsel %vm72, %v65, 920167782
    %v79 = vsel %vm71, %v62, %v78
    %v80 = vsel %vm70, %v77, %v79
    %v81 = vsel %vm69, %v59, %v62
    %v82 = vsel %vm72, %v68, 1326507024
    %v83 = vsel %vm71, %v65, %v82
    %v84 = vsel %vm70, %v81, %v83
    %v85 = vshll.u32 %v45, 8
    %v86 = vmul.u32.u64.compose %v85, %v84
    %v87 = vextract.low.u32 %v86
    %v88 = vextract.high.u32 %v86
    %v89 = vmul.u32.u64.compose %v85, %v80
    %v90 = vextract.low.u32 %v89
    %v91 = vextract.high.u32 %v89
    %v92 = vmul.u32 %v85, %v76
    %v93 = vadd.s32 %v88, %v90
    %vm94 = vc.u32 %v88, %v90
    %v95 = vadd.s32 %v91, 1
    %v96 = vsel %vm94, %v95, %v91
    %v97 = vadd.s32 %v92, %v96
    %v98 = vadd.s32 %v97, 536870912
    %v99 = vshrl.u32 %v98, 30
    %v100 = vshll.u32 %v99, 30
    %v101 = vsub.s32 %v97, %v100
    %vm102 = vcmp.lt.s32.totalorder %v101, 0
    %v103 = vsub.s32 0, %v101
    %v104 = vsel %vm102, %v103, %v101
    %v105 = vclz %v104
    %v106 = vsub.s32 %v105, 2
    %vm107 = vcmp.gt.s32.totalorder 0, %v106
    %v108 = vsel %vm107, 0, %v106
    %v109 = vsub.s32 32, %v108
    %v110 = vshll.u32 %v101, %v108
    %v111 = vshrl.u32 %v93, %v109
    %v112 = vor.u32 %v110, %v111
    %v113 = vsub.s32 4294967266, %v108
    %v114 = vadd.s32 %v113, 127
    %v115 = vshll.u32 %v114, 23
    %v116 = vor.u32 4788187, %v115
    %v117 = vand.u32 2147483647, %v116
    %v119 = vcvt.s32.f32 %v112
    %v120 = vmul.f32 %v119, %v117
    %v121 = vxor.u32 %v120, 2147483648
    %v122 = vsel %vm39, %v121, %v120
    %v123 = vsub.s32 4, %v99
    %v124 = vsel %vm39, %v123, %v99
    %v125 = vsel %vm38, %v36, %v122
    %v126 = vsel %vm38, 0, %v124
    %v127 = vcosq.f32.pop %v125
    %v128 = vsinq.f32.pop %v125
    %vm129 = vweird.f32 %v36
    %v130 = vand.u32 %v126, 3
    %vm131 = vcmp.lt.s32.totalorder %v130, 2
    %vm132 = vcmp.eq.s32.totalorder %v130, 0
    %v133 = vxor.u32 %v128, 2147483648
    %v134 = vsel %vm132, %v127, %v133
    %vm135 = vcmp.eq.s32.totalorder %v130, 2
    %v136 = vxor.u32 %v127, 2147483648
    %v137 = vsel %vm135, %v136, %v128
    %v138 = vsel %vm131, %v134, %v137
    %v139 = vsel %vm129, nan, %v138
    %v140 = vand.u32 2147483647, %v36
    %vm141 = vcmp.le.f32.partialorder %v140, 0.7853982
    %vm142 = vcmp.lt.s32.totalorder %v36, 0
    %v143 = vand.u32 %v36, 2139095040
    %v144 = vshrl.u32 %v143, 23
    %v145 = vsub.s32 %v144, 127
    %v146 = vand.u32 2147483647, %v36
    %v147 = vand.u32 %v146, 8388607
    %v148 = vor.u32 %v147, 8388608
    %v149 = vsub.s32 0, %v148
    %v150 = vadd.s32 %v145, 1
    %vm151 = vcmp.gt.s32.totalorder %v150, 0
    %v152 = vsel %vm151, %v150, 0
    %v153 = vshrl.u32 %v152, 5
    %v154 = vand.u32 %v152, 31
    %v155 = vsub.s32 32, %v154
    %v156 = vshrl.u32 683565275, %v155
    %v157 = vshll.u32 683565275, %v154
    %v158 = vshrl.u32 2475754826, %v155
    %v159 = vor.u32 %v157, %v158
    %v160 = vshll.u32 2475754826, %v154
    %v161 = vshrl.u32 2131351028, %v155
    %v162 = vor.u32 %v160, %v161
    %v163 = vshll.u32 2131351028, %v154
    %v164 = vshrl.u32 2102212464, %v155
    %v165 = vor.u32 %v163, %v164
    %v166 = vshll.u32 2102212464, %v154
    %v167 = vshrl.u32 920167782, %v155
    %v168 = vor.u32 %v166, %v167
    %v169 = vshll.u32 920167782, %v154
    %v170 = vshrl.u32 1326507024, %v155
    %v171 = vor.u32 %v169, %v170
    %vm172 = vcmp.lt.s32.totalorder %v153, 1
    %vm173 = vcmp.lt.s32.totalorder %v153, 2
    %vm174 = vcmp.lt.s32.totalorder %v153, 3
    %vm175 = vcmp.lt.s32.totalorder %v153, 4
    %v176 = vsel %vm172, %v156, %v159
    %v177 = vsel %vm175, %v165, 2102212464
    %v178 = vsel %vm174, %v162, %v177
    %v179 = vsel %vm173, %v176, %v178
    %v180 = vsel %vm172, %v159, %v162
    %v181 = vsel %vm175, %v168, 920167782
    %v182 = vsel %vm174, %v165, %v181
    %v183 = vsel %vm173, %v180, %v182
    %v184 = vsel %vm172, %v162, %v165
    %v185 = vsel %vm175, %v171, 1326507024
    %v186 = vsel %vm174, %v168, %v185
    %v187 = vsel %vm173, %v184, %v186
    %v188 = vshll.u32 %v148, 8
    %v189 = vmul.u32.u64.compose %v188, %v187
    %v190 = vextract.low.u32 %v189
    %v191 = vextract.high.u32 %v189
    %v192 = vmul.u32.u64.compose %v188, %v183
    %v193 = vextract.low.u32 %v192
    %v194 = vextract.high.u32 %v192
    %v195 = vmul.u32 %v188, %v179
    %v196 = vadd.s32 %v191, %v193
    %vm197 = vc.u32 %v191, %v193
    %v198 = vadd.s32 %v194, 1
    %v199 = vsel %vm197, %v198, %v194
    %v200 = vadd.s32 %v195, %v199
    %v201 = vadd.s32 %v200, 536870912
    %v202 = vshrl.u32 %v201, 30
    %v203 = vshll.u32 %v202, 30
    %v204 = vsub.s32 %v200, %v203
    %vm205 = vcmp.lt.s32.totalorder %v204, 0
    %v206 = vsub.s32 0, %v204
    %v207 = vsel %vm205, %v206, %v204
    %v208 = vclz %v207
    %v209 = vsub.s32 %v208, 2
    %vm210 = vcmp.gt.s32.totalorder 0, %v209
    %v211 = vsel %vm210, 0, %v209
    %v212 = vsub.s32 32, %v211
    %v213 = vshll.u32 %v204, %v211
    %v214 = vshrl.u32 %v196, %v212
    %v215 = vor.u32 %v213, %v214
    %v216 = vsub.s32 4294967266, %v211
    %v217 = vadd.s32 %v216, 127
    %v218 = vshll.u32 %v217, 23
    %v219 = vor.u32 4788187, %v218
    %v220 = vand.u32 2147483647, %v219
    %v222 = vcvt.s32.f32 %v215
    %v223 = vmul.f32 %v222, %v220
    %v224 = vxor.u32 %v223, 2147483648
    %v225 = vsel %vm142, %v224, %v223
    %v226 = vsub.s32 4, %v202
    %v227 = vsel %vm142, %v226, %v202
    %v228 = vsel %vm141, %v36, %v225
    %v229 = vsel %vm141, 0, %v227
    %v230 = vcosq.f32.pop %v228
    %v231 = vsinq.f32.pop %v228
    %vm232 = vweird.f32 %v36
    %v233 = vadd.s32 %v229, 3
    %v234 = vand.u32 %v233, 3
    %vm235 = vcmp.lt.s32.totalorder %v234, 2
    %vm236 = vcmp.eq.s32.totalorder %v234, 0
    %v237 = vxor.u32 %v231, 2147483648
    %v238 = vsel %vm236, %v230, %v237
    %vm239 = vcmp.eq.s32.totalorder %v234, 2
    %v240 = vxor.u32 %v230, 2147483648
    %v241 = vsel %vm239, %v240, %v231
    %v242 = vsel %vm235, %v238, %v241
    %v243 = vsel %vm232, nan, %v242
    %245 = vrot.lane.b32.xlu0 %v139, 16
    %v246 = vpop.permute.xlu0 %245
    %vm248 = vcmask 130048
    %v249 = vsel %vm248, %v139, %v246
    %vm250 = vcmask 254976
    %251 = vst.msk [vmem:[#allocation5] sm:$0x3] %vm250, %v249
    %253 = vrot.lane.b32.xlu0 %v243, 16
    %v254 = vpop.permute.xlu0 %253
    %v256 = vsel %vm248, %v243, %v254
    %257 = vst.msk [vmem:[#allocation6] sm:$0x3] %vm250, %v256
    // Predicated region
    $region14: #{tpu_custom_call.1} parent=1 // pred_check
      _
    $region15: #{tpu_custom_call.1} parent=1 // pred_check_branch
      %259 = sbr.rel (0) target = $region17
    $region16: #{tpu_custom_call.1} parent=1 // pred_region
      %s261 = ssub.s32 32, 32
      %262 = vsyncadd [#allocation4], %s261
      %s264 = sshll.u32 [#allocation5], 4
      %s265 = int_to_ptr.vmem [resolvable:$true] %s264
      %267 = dma.vmem_to_hbm [thread:$0]  %s265, 32, %s2, [#allocation4]
    $region17: #{tpu_custom_call.1} parent=1 // pred_fallthru
      _
    // Predicated region
    $region18: #{tpu_custom_call.1} parent=1 // pred_check
      _
    $region19: #{tpu_custom_call.1} parent=1 // pred_check_branch
      %269 = sbr.rel (0) target = $region21
    $region20: #{tpu_custom_call.1} parent=1 // pred_region
      %s271 = ssub.s32 32, 32
      %272 = vsyncadd [#allocation7], %s271
      %s274 = sshll.u32 [#allocation6], 4
      %s275 = int_to_ptr.vmem [resolvable:$true] %s274
      %277 = dma.vmem_to_hbm [thread:$0]  %s275, 32, %s3, [#allocation7]
    $region21: #{tpu_custom_call.1} parent=1 // pred_fallthru
      _
    // Predicated region
    $region22: #{tpu_custom_call.1} parent=1 // pred_check
      _
    $region23: #{tpu_custom_call.1} parent=1 // pred_check_branch
      %279 = sbr.rel (0) target = $region25
    $region24: #{tpu_custom_call.1} parent=1 // pred_region
      %280 = dma.done [#allocation4], 32
    $region25: #{tpu_custom_call.1} parent=1 // pred_fallthru
      _
    // Predicated region
    $region26: #{tpu_custom_call.1} parent=1 // pred_check
      _
    $region27: #{tpu_custom_call.1} parent=1 // pred_check_branch
      %282 = sbr.rel (0) target = $region29
    $region28: #{tpu_custom_call.1} parent=1 // pred_region
      %283 = dma.done [#allocation7], 32
    $region29: #{tpu_custom_call.1} parent=1 // pred_fallthru
      _
    %284 = vsyncpa [#allocation3], 1
    %285 = vsyncpa [#allocation4], 1
    %286 = vsyncpa [#allocation7], 1

</llo_original>
